<compile_context>
chip_gen: v5e
topology: v5e:2x2
jax: 0.10.0
libtpu: 0.0.40
codegen_flags: <defaults>
</compile_context>

<pallas_src>
import jax
import jax.numpy as jnp
from jax.experimental import pallas as pl
from jax.experimental.pallas import tpu as pltpu


LANE = 128            # lane width of the packed batch layout
MIN_TILE = 8 * LANE   # 1024: one (8,128) vreg = minimum / granularity of a batch tile


def residual_kernel(
    x0_ref, x1_ref,                          # (TS, 128) VMEM f32 — feature channels, batch dense
    w1a_ref, b1a_ref, w1b_ref, b1b_ref,      # 1-D SMEM scalar tables
    w2a_ref, b2a_ref, w2b_ref, b2b_ref,
    w3_ref, b3_ref,
    out_ref,                                 # (TS, 128) VMEM f32
):
    H = b1a_ref.shape[0]                     # static num_hidden

    x0 = x0_ref[...]                         # full-vreg (TS, 128) tiles
    x1 = x1_ref[...]

    def res_block(x0, x1, wa, ba, wb, bb):
        # y[m] = x[m] + bb[m] + sum_n wb[n,m] * relu(wa[0,n]*x0 + wa[1,n]*x1 + ba[n])
        # wa is (2,H) flattened row-major; wb is (H,2) flattened row-major.
        y0 = x0 + bb[0]                      # residual + bias folded together
        y1 = x1 + bb[1]
        for n in range(H):                   # tiny static H — unrolled VPU FMAs
            h = jnp.maximum(wa[n] * x0 + (wa[H + n] * x1 + ba[n]), 0.0)
            y0 = y0 + wb[2 * n] * h
            y1 = y1 + wb[2 * n + 1] * h
        return y0, y1

    x0, x1 = res_block(x0, x1, w1a_ref, b1a_ref, w1b_ref, b1b_ref)
    x0, x1 = res_block(x0, x1, w2a_ref, b2a_ref, w2b_ref, b2b_ref)

    # final linear 2 -> 1 (bias folded into the second FMA) + sigmoid
    z = w3_ref[0] * x0 + (w3_ref[1] * x1 + b3_ref[0])
    e = jnp.exp(-z)                          # EUP slot — free while the VALU is the binding unit
    out_ref[...] = 1.0 / (1.0 + e)           # exact divide (keeps the 1e-5 check; 1/inf -> 0 safe)


def _round_up(x, m):
    return ((x + m - 1) // m) * m


def residual_model(x, params, *, tb=131072):
    """x: (B, 2) float32; params: 10 arrays (weights stored (in,out), biases (1,out))."""
    B, F = x.shape
    assert F == 2
    x = x.astype(jnp.float32)

    # Batch tile (elements per grid step).  Forced to a multiple of 8*128 so the
    # (TS, 128) block satisfies (8,128) divisibility; large by default to amortize
    # per-step overhead; capped so tiny batches aren't over-padded and so that
    # n_tiles >= 2 whenever possible (both v7x TensorCores get work).
    b_min_pad = _round_up(B, MIN_TILE)
    tb = _round_up(max(int(tb), 1), MIN_TILE)
    tb = min(tb, b_min_pad)
    if b_min_pad >= 2 * MIN_TILE:
        tb = min(tb, max(MIN_TILE, (b_min_pad // 2) // MIN_TILE * MIN_TILE))
    assert tb % MIN_TILE == 0

    B_pad = _round_up(B, tb)
    n_tiles = B_pad // tb
    ts = tb // LANE                      # sublanes per block (multiple of 8)
    s_total = B_pad // LANE

    # Channel-split, batch-dense layout: each feature channel becomes a
    # (B_pad/128, 128) slab.  Single cheap pad+reshape pass per channel — no
    # transpose of a zero-filled buffer.  Padded tail passes harmlessly through
    # relu/sigmoid and is sliced off below.
    pad = B_pad - B
    x0 = jnp.pad(x[:, 0], (0, pad)).reshape(s_total, LANE)
    x1 = jnp.pad(x[:, 1], (0, pad)).reshape(s_total, LANE)

    # Flatten the tiny weight/bias tables to 1-D: their SMEM footprint becomes a few
    # hundred bytes total (2-D SMEM tables would each pad to an [8,128]-word tile).
    flat_params = [jnp.ravel(p) for p in params]

    chan_spec = pl.BlockSpec((ts, LANE), lambda i: (i, 0))
    smem = pl.BlockSpec(memory_space=pltpu.MemorySpace.SMEM)
    out2d = pl.pallas_call(
        residual_kernel,
        out_shape=jax.ShapeDtypeStruct((s_total, LANE), jnp.float32),
        grid=(n_tiles,),
        in_specs=[chan_spec, chan_spec] + [smem] * len(flat_params),
        out_specs=pl.BlockSpec((ts, LANE), lambda i: (i, 0)),
        compiler_params=pltpu.CompilerParams(
            dimension_semantics=("parallel",)),   # shards the batch across v7x's 2 TCs
    )(x0, x1, *flat_params)

    return out2d.reshape(B_pad)[:B].reshape(B, 1)


def init_params(key, num_hidden):
    """Deterministic init matching nn.Linear shapes; weights stored as (in, out)."""
    ks = jax.random.split(key, 10)

    def linear(kw, kb, fan_in, fan_out):
        bound = 1.0 / jnp.sqrt(float(fan_in))
        w = jax.random.uniform(kw, (fan_in, fan_out), jnp.float32, -bound, bound)
        b = jax.random.uniform(kb, (1, fan_out), jnp.float32, -bound, bound)
        return w, b

    w1a, b1a = linear(ks[0], ks[1], 2, num_hidden)
    w1b, b1b = linear(ks[2], ks[3], num_hidden, 2)
    w2a, b2a = linear(ks[4], ks[5], 2, num_hidden)
    w2b, b2b = linear(ks[6], ks[7], num_hidden, 2)
    w3, b3 = linear(ks[8], ks[9], 2, 1)
    return (w1a, b1a, w1b, b1b, w2a, b2a, w2b, b2b, w3, b3)


def reference_forward(x, params):
    w1a, b1a, w1b, b1b, w2a, b2a, w2b, b2b, w3, b3 = params
    x = jnp.maximum(x @ w1a + b1a, 0.0) @ w1b + b1b + x
    x = jnp.maximum(x @ w2a + b2a, 0.0) @ w2b + b2b + x
    return jax.nn.sigmoid(x @ w3 + b3)


if __name__ == "__main__":
    num_hidden = 4
    batch = 8

    key = jax.random.PRNGKey(0)
    kx, kp = jax.random.split(key)
    x = jax.random.normal(kx, (batch, 2), jnp.float32)
    params = init_params(kp, num_hidden)

    out = residual_model(x, params)
    out = jax.block_until_ready(out)

    ref = reference_forward(x, params)
    assert out.shape == (batch, 1)
    assert jnp.allclose(out, ref, atol=1e-5, rtol=1e-5)

    # Multi-tile path: non-multiple-of-1024 batch; requested tb is clamped/capped so
    # that n_tiles >= 2 (v7x two-TC sharding) and stays a multiple of 1024.
    x_big = jax.random.normal(kx, (3000, 2), jnp.float32)
    out_big = jax.block_until_ready(residual_model(x_big, params, tb=2048))
    assert out_big.shape == (3000, 1)
    assert jnp.allclose(out_big, reference_forward(x_big, params), atol=1e-5, rtol=1e-5)

    # Awkward user tb (not a multiple of 1024) must be rounded up, not rejected.
    out_odd = jax.block_until_ready(residual_model(x_big, params, tb=1000))
    assert jnp.allclose(out_odd, reference_forward(x_big, params), atol=1e-5, rtol=1e-5)

    print("KERNEL_OK")
</pallas_src>

<mosaic_0001>
module attributes {stable_mosaic.version = 11 : i64} {
  func.func @residual_kernel(%arg0: i32, %arg1: memref<8x128xf32, #tpu.memory_space<vmem>>, %arg2: memref<8x128xf32, #tpu.memory_space<vmem>>, %arg3: memref<8xf32, #tpu.memory_space<smem>>, %arg4: memref<4xf32, #tpu.memory_space<smem>>, %arg5: memref<8xf32, #tpu.memory_space<smem>>, %arg6: memref<2xf32, #tpu.memory_space<smem>>, %arg7: memref<8xf32, #tpu.memory_space<smem>>, %arg8: memref<4xf32, #tpu.memory_space<smem>>, %arg9: memref<8xf32, #tpu.memory_space<smem>>, %arg10: memref<2xf32, #tpu.memory_space<smem>>, %arg11: memref<2xf32, #tpu.memory_space<smem>>, %arg12: memref<1xf32, #tpu.memory_space<smem>>, %arg13: memref<8x128xf32, #tpu.memory_space<vmem>>) attributes {dimension_semantics = [#tpu.dimension_semantics<parallel>], iteration_bounds = array<i64: 1>, scalar_prefetch = 0 : i64, scratch_operands = 0 : i64, tpu.core_type = #tpu.core_type<tc>, window_params = [{transform_indices = @transform_0, window_bounds = array<i64: 8, 128>}, {transform_indices = @transform_1, window_bounds = array<i64: 8, 128>}, {transform_indices = @transform_2, window_bounds = array<i64: 8>}, {transform_indices = @transform_3, window_bounds = array<i64: 4>}, {transform_indices = @transform_4, window_bounds = array<i64: 8>}, {transform_indices = @transform_5, window_bounds = array<i64: 2>}, {transform_indices = @transform_6, window_bounds = array<i64: 8>}, {transform_indices = @transform_7, window_bounds = array<i64: 4>}, {transform_indices = @transform_8, window_bounds = array<i64: 8>}, {transform_indices = @transform_9, window_bounds = array<i64: 2>}, {transform_indices = @transform_10, window_bounds = array<i64: 2>}, {transform_indices = @transform_11, window_bounds = array<i64: 1>}, {transform_indices = @transform_12, window_bounds = array<i64: 8, 128>}]} {
    %c0 = arith.constant 0 : index
    %c0_0 = arith.constant 0 : index
    %0 = vector.load %arg1[%c0, %c0_0] : memref<8x128xf32, #tpu.memory_space<vmem>>, vector<8x128xf32>
    %c0_1 = arith.constant 0 : index
    %c0_2 = arith.constant 0 : index
    %1 = vector.load %arg2[%c0_1, %c0_2] : memref<8x128xf32, #tpu.memory_space<vmem>>, vector<8x128xf32>
    %c0_3 = arith.constant 0 : index
    %2 = memref.load %arg6[%c0_3] : memref<2xf32, #tpu.memory_space<smem>>
    %3 = vector.broadcast %2 : f32 to vector<8x128xf32>
    %4 = arith.addf %0, %3 : vector<8x128xf32>
    %c1 = arith.constant 1 : index
    %5 = memref.load %arg6[%c1] : memref<2xf32, #tpu.memory_space<smem>>
    %6 = vector.broadcast %5 : f32 to vector<8x128xf32>
    %7 = arith.addf %1, %6 : vector<8x128xf32>
    %c0_4 = arith.constant 0 : index
    %8 = memref.load %arg3[%c0_4] : memref<8xf32, #tpu.memory_space<smem>>
    %9 = vector.broadcast %8 : f32 to vector<8x128xf32>
    %10 = arith.mulf %9, %0 : vector<8x128xf32>
    %c4 = arith.constant 4 : index
    %11 = memref.load %arg3[%c4] : memref<8xf32, #tpu.memory_space<smem>>
    %12 = vector.broadcast %11 : f32 to vector<8x128xf32>
    %13 = arith.mulf %12, %1 : vector<8x128xf32>
    %c0_5 = arith.constant 0 : index
    %14 = memref.load %arg4[%c0_5] : memref<4xf32, #tpu.memory_space<smem>>
    %15 = vector.broadcast %14 : f32 to vector<8x128xf32>
    %16 = arith.addf %13, %15 : vector<8x128xf32>
    %17 = arith.addf %10, %16 : vector<8x128xf32>
    %cst = arith.constant 0.000000e+00 : f32
    %18 = vector.broadcast %cst : f32 to vector<8x128xf32>
    %19 = arith.maximumf %17, %18 : vector<8x128xf32>
    %c0_6 = arith.constant 0 : index
    %20 = memref.load %arg5[%c0_6] : memref<8xf32, #tpu.memory_space<smem>>
    %21 = vector.broadcast %20 : f32 to vector<8x128xf32>
    %22 = arith.mulf %21, %19 : vector<8x128xf32>
    %23 = arith.addf %4, %22 : vector<8x128xf32>
    %c1_7 = arith.constant 1 : index
    %24 = memref.load %arg5[%c1_7] : memref<8xf32, #tpu.memory_space<smem>>
    %25 = vector.broadcast %24 : f32 to vector<8x128xf32>
    %26 = arith.mulf %25, %19 : vector<8x128xf32>
    %27 = arith.addf %7, %26 : vector<8x128xf32>
    %c1_8 = arith.constant 1 : index
    %28 = memref.load %arg3[%c1_8] : memref<8xf32, #tpu.memory_space<smem>>
    %29 = vector.broadcast %28 : f32 to vector<8x128xf32>
    %30 = arith.mulf %29, %0 : vector<8x128xf32>
    %c5 = arith.constant 5 : index
    %31 = memref.load %arg3[%c5] : memref<8xf32, #tpu.memory_space<smem>>
    %32 = vector.broadcast %31 : f32 to vector<8x128xf32>
    %33 = arith.mulf %32, %1 : vector<8x128xf32>
    %c1_9 = arith.constant 1 : index
    %34 = memref.load %arg4[%c1_9] : memref<4xf32, #tpu.memory_space<smem>>
    %35 = vector.broadcast %34 : f32 to vector<8x128xf32>
    %36 = arith.addf %33, %35 : vector<8x128xf32>
    %37 = arith.addf %30, %36 : vector<8x128xf32>
    %cst_10 = arith.constant 0.000000e+00 : f32
    %38 = vector.broadcast %cst_10 : f32 to vector<8x128xf32>
    %39 = arith.maximumf %37, %38 : vector<8x128xf32>
    %c2 = arith.constant 2 : index
    %40 = memref.load %arg5[%c2] : memref<8xf32, #tpu.memory_space<smem>>
    %41 = vector.broadcast %40 : f32 to vector<8x128xf32>
    %42 = arith.mulf %41, %39 : vector<8x128xf32>
    %43 = arith.addf %23, %42 : vector<8x128xf32>
    %c3 = arith.constant 3 : index
    %44 = memref.load %arg5[%c3] : memref<8xf32, #tpu.memory_space<smem>>
    %45 = vector.broadcast %44 : f32 to vector<8x128xf32>
    %46 = arith.mulf %45, %39 : vector<8x128xf32>
    %47 = arith.addf %27, %46 : vector<8x128xf32>
    %c2_11 = arith.constant 2 : index
    %48 = memref.load %arg3[%c2_11] : memref<8xf32, #tpu.memory_space<smem>>
    %49 = vector.broadcast %48 : f32 to vector<8x128xf32>
    %50 = arith.mulf %49, %0 : vector<8x128xf32>
    %c6 = arith.constant 6 : index
    %51 = memref.load %arg3[%c6] : memref<8xf32, #tpu.memory_space<smem>>
    %52 = vector.broadcast %51 : f32 to vector<8x128xf32>
    %53 = arith.mulf %52, %1 : vector<8x128xf32>
    %c2_12 = arith.constant 2 : index
    %54 = memref.load %arg4[%c2_12] : memref<4xf32, #tpu.memory_space<smem>>
    %55 = vector.broadcast %54 : f32 to vector<8x128xf32>
    %56 = arith.addf %53, %55 : vector<8x128xf32>
    %57 = arith.addf %50, %56 : vector<8x128xf32>
    %cst_13 = arith.constant 0.000000e+00 : f32
    %58 = vector.broadcast %cst_13 : f32 to vector<8x128xf32>
    %59 = arith.maximumf %57, %58 : vector<8x128xf32>
    %c4_14 = arith.constant 4 : index
    %60 = memref.load %arg5[%c4_14] : memref<8xf32, #tpu.memory_space<smem>>
    %61 = vector.broadcast %60 : f32 to vector<8x128xf32>
    %62 = arith.mulf %61, %59 : vector<8x128xf32>
    %63 = arith.addf %43, %62 : vector<8x128xf32>
    %c5_15 = arith.constant 5 : index
    %64 = memref.load %arg5[%c5_15] : memref<8xf32, #tpu.memory_space<smem>>
    %65 = vector.broadcast %64 : f32 to vector<8x128xf32>
    %66 = arith.mulf %65, %59 : vector<8x128xf32>
    %67 = arith.addf %47, %66 : vector<8x128xf32>
    %c3_16 = arith.constant 3 : index
    %68 = memref.load %arg3[%c3_16] : memref<8xf32, #tpu.memory_space<smem>>
    %69 = vector.broadcast %68 : f32 to vector<8x128xf32>
    %70 = arith.mulf %69, %0 : vector<8x128xf32>
    %c7 = arith.constant 7 : index
    %71 = memref.load %arg3[%c7] : memref<8xf32, #tpu.memory_space<smem>>
    %72 = vector.broadcast %71 : f32 to vector<8x128xf32>
    %73 = arith.mulf %72, %1 : vector<8x128xf32>
    %c3_17 = arith.constant 3 : index
    %74 = memref.load %arg4[%c3_17] : memref<4xf32, #tpu.memory_space<smem>>
    %75 = vector.broadcast %74 : f32 to vector<8x128xf32>
    %76 = arith.addf %73, %75 : vector<8x128xf32>
    %77 = arith.addf %70, %76 : vector<8x128xf32>
    %cst_18 = arith.constant 0.000000e+00 : f32
    %78 = vector.broadcast %cst_18 : f32 to vector<8x128xf32>
    %79 = arith.maximumf %77, %78 : vector<8x128xf32>
    %c6_19 = arith.constant 6 : index
    %80 = memref.load %arg5[%c6_19] : memref<8xf32, #tpu.memory_space<smem>>
    %81 = vector.broadcast %80 : f32 to vector<8x128xf32>
    %82 = arith.mulf %81, %79 : vector<8x128xf32>
    %83 = arith.addf %63, %82 : vector<8x128xf32>
    %c7_20 = arith.constant 7 : index
    %84 = memref.load %arg5[%c7_20] : memref<8xf32, #tpu.memory_space<smem>>
    %85 = vector.broadcast %84 : f32 to vector<8x128xf32>
    %86 = arith.mulf %85, %79 : vector<8x128xf32>
    %87 = arith.addf %67, %86 : vector<8x128xf32>
    %c0_21 = arith.constant 0 : index
    %88 = memref.load %arg10[%c0_21] : memref<2xf32, #tpu.memory_space<smem>>
    %89 = vector.broadcast %88 : f32 to vector<8x128xf32>
    %90 = arith.addf %83, %89 : vector<8x128xf32>
    %c1_22 = arith.constant 1 : index
    %91 = memref.load %arg10[%c1_22] : memref<2xf32, #tpu.memory_space<smem>>
    %92 = vector.broadcast %91 : f32 to vector<8x128xf32>
    %93 = arith.addf %87, %92 : vector<8x128xf32>
    %c0_23 = arith.constant 0 : index
    %94 = memref.load %arg7[%c0_23] : memref<8xf32, #tpu.memory_space<smem>>
    %95 = vector.broadcast %94 : f32 to vector<8x128xf32>
    %96 = arith.mulf %95, %83 : vector<8x128xf32>
    %c4_24 = arith.constant 4 : index
    %97 = memref.load %arg7[%c4_24] : memref<8xf32, #tpu.memory_space<smem>>
    %98 = vector.broadcast %97 : f32 to vector<8x128xf32>
    %99 = arith.mulf %98, %87 : vector<8x128xf32>
    %c0_25 = arith.constant 0 : index
    %100 = memref.load %arg8[%c0_25] : memref<4xf32, #tpu.memory_space<smem>>
    %101 = vector.broadcast %100 : f32 to vector<8x128xf32>
    %102 = arith.addf %99, %101 : vector<8x128xf32>
    %103 = arith.addf %96, %102 : vector<8x128xf32>
    %cst_26 = arith.constant 0.000000e+00 : f32
    %104 = vector.broadcast %cst_26 : f32 to vector<8x128xf32>
    %105 = arith.maximumf %103, %104 : vector<8x128xf32>
    %c0_27 = arith.constant 0 : index
    %106 = memref.load %arg9[%c0_27] : memref<8xf32, #tpu.memory_space<smem>>
    %107 = vector.broadcast %106 : f32 to vector<8x128xf32>
    %108 = arith.mulf %107, %105 : vector<8x128xf32>
    %109 = arith.addf %90, %108 : vector<8x128xf32>
    %c1_28 = arith.constant 1 : index
    %110 = memref.load %arg9[%c1_28] : memref<8xf32, #tpu.memory_space<smem>>
    %111 = vector.broadcast %110 : f32 to vector<8x128xf32>
    %112 = arith.mulf %111, %105 : vector<8x128xf32>
    %113 = arith.addf %93, %112 : vector<8x128xf32>
    %c1_29 = arith.constant 1 : index
    %114 = memref.load %arg7[%c1_29] : memref<8xf32, #tpu.memory_space<smem>>
    %115 = vector.broadcast %114 : f32 to vector<8x128xf32>
    %116 = arith.mulf %115, %83 : vector<8x128xf32>
    %c5_30 = arith.constant 5 : index
    %117 = memref.load %arg7[%c5_30] : memref<8xf32, #tpu.memory_space<smem>>
    %118 = vector.broadcast %117 : f32 to vector<8x128xf32>
    %119 = arith.mulf %118, %87 : vector<8x128xf32>
    %c1_31 = arith.constant 1 : index
    %120 = memref.load %arg8[%c1_31] : memref<4xf32, #tpu.memory_space<smem>>
    %121 = vector.broadcast %120 : f32 to vector<8x128xf32>
    %122 = arith.addf %119, %121 : vector<8x128xf32>
    %123 = arith.addf %116, %122 : vector<8x128xf32>
    %cst_32 = arith.constant 0.000000e+00 : f32
    %124 = vector.broadcast %cst_32 : f32 to vector<8x128xf32>
    %125 = arith.maximumf %123, %124 : vector<8x128xf32>
    %c2_33 = arith.constant 2 : index
    %126 = memref.load %arg9[%c2_33] : memref<8xf32, #tpu.memory_space<smem>>
    %127 = vector.broadcast %126 : f32 to vector<8x128xf32>
    %128 = arith.mulf %127, %125 : vector<8x128xf32>
    %129 = arith.addf %109, %128 : vector<8x128xf32>
    %c3_34 = arith.constant 3 : index
    %130 = memref.load %arg9[%c3_34] : memref<8xf32, #tpu.memory_space<smem>>
    %131 = vector.broadcast %130 : f32 to vector<8x128xf32>
    %132 = arith.mulf %131, %125 : vector<8x128xf32>
    %133 = arith.addf %113, %132 : vector<8x128xf32>
    %c2_35 = arith.constant 2 : index
    %134 = memref.load %arg7[%c2_35] : memref<8xf32, #tpu.memory_space<smem>>
    %135 = vector.broadcast %134 : f32 to vector<8x128xf32>
    %136 = arith.mulf %135, %83 : vector<8x128xf32>
    %c6_36 = arith.constant 6 : index
    %137 = memref.load %arg7[%c6_36] : memref<8xf32, #tpu.memory_space<smem>>
    %138 = vector.broadcast %137 : f32 to vector<8x128xf32>
    %139 = arith.mulf %138, %87 : vector<8x128xf32>
    %c2_37 = arith.constant 2 : index
    %140 = memref.load %arg8[%c2_37] : memref<4xf32, #tpu.memory_space<smem>>
    %141 = vector.broadcast %140 : f32 to vector<8x128xf32>
    %142 = arith.addf %139, %141 : vector<8x128xf32>
    %143 = arith.addf %136, %142 : vector<8x128xf32>
    %cst_38 = arith.constant 0.000000e+00 : f32
    %144 = vector.broadcast %cst_38 : f32 to vector<8x128xf32>
    %145 = arith.maximumf %143, %144 : vector<8x128xf32>
    %c4_39 = arith.constant 4 : index
    %146 = memref.load %arg9[%c4_39] : memref<8xf32, #tpu.memory_space<smem>>
    %147 = vector.broadcast %146 : f32 to vector<8x128xf32>
    %148 = arith.mulf %147, %145 : vector<8x128xf32>
    %149 = arith.addf %129, %148 : vector<8x128xf32>
    %c5_40 = arith.constant 5 : index
    %150 = memref.load %arg9[%c5_40] : memref<8xf32, #tpu.memory_space<smem>>
    %151 = vector.broadcast %150 : f32 to vector<8x128xf32>
    %152 = arith.mulf %151, %145 : vector<8x128xf32>
    %153 = arith.addf %133, %152 : vector<8x128xf32>
    %c3_41 = arith.constant 3 : index
    %154 = memref.load %arg7[%c3_41] : memref<8xf32, #tpu.memory_space<smem>>
    %155 = vector.broadcast %154 : f32 to vector<8x128xf32>
    %156 = arith.mulf %155, %83 : vector<8x128xf32>
    %c7_42 = arith.constant 7 : index
    %157 = memref.load %arg7[%c7_42] : memref<8xf32, #tpu.memory_space<smem>>
    %158 = vector.broadcast %157 : f32 to vector<8x128xf32>
    %159 = arith.mulf %158, %87 : vector<8x128xf32>
    %c3_43 = arith.constant 3 : index
    %160 = memref.load %arg8[%c3_43] : memref<4xf32, #tpu.memory_space<smem>>
    %161 = vector.broadcast %160 : f32 to vector<8x128xf32>
    %162 = arith.addf %159, %161 : vector<8x128xf32>
    %163 = arith.addf %156, %162 : vector<8x128xf32>
    %cst_44 = arith.constant 0.000000e+00 : f32
    %164 = vector.broadcast %cst_44 : f32 to vector<8x128xf32>
    %165 = arith.maximumf %163, %164 : vector<8x128xf32>
    %c6_45 = arith.constant 6 : index
    %166 = memref.load %arg9[%c6_45] : memref<8xf32, #tpu.memory_space<smem>>
    %167 = vector.broadcast %166 : f32 to vector<8x128xf32>
    %168 = arith.mulf %167, %165 : vector<8x128xf32>
    %169 = arith.addf %149, %168 : vector<8x128xf32>
    %c7_46 = arith.constant 7 : index
    %170 = memref.load %arg9[%c7_46] : memref<8xf32, #tpu.memory_space<smem>>
    %171 = vector.broadcast %170 : f32 to vector<8x128xf32>
    %172 = arith.mulf %171, %165 : vector<8x128xf32>
    %173 = arith.addf %153, %172 : vector<8x128xf32>
    %c0_47 = arith.constant 0 : index
    %174 = memref.load %arg11[%c0_47] : memref<2xf32, #tpu.memory_space<smem>>
    %175 = vector.broadcast %174 : f32 to vector<8x128xf32>
    %176 = arith.mulf %175, %169 : vector<8x128xf32>
    %c1_48 = arith.constant 1 : index
    %177 = memref.load %arg11[%c1_48] : memref<2xf32, #tpu.memory_space<smem>>
    %178 = vector.broadcast %177 : f32 to vector<8x128xf32>
    %179 = arith.mulf %178, %173 : vector<8x128xf32>
    %c0_49 = arith.constant 0 : index
    %180 = memref.load %arg12[%c0_49] : memref<1xf32, #tpu.memory_space<smem>>
    %181 = vector.broadcast %180 : f32 to vector<8x128xf32>
    %182 = arith.addf %179, %181 : vector<8x128xf32>
    %183 = arith.addf %176, %182 : vector<8x128xf32>
    %cst_50 = arith.constant 0.000000e+00 : f32
    %184 = vector.broadcast %cst_50 : f32 to vector<8x128xf32>
    %185 = arith.subf %184, %183 : vector<8x128xf32>
    %186 = math.exp %185 : vector<8x128xf32>
    %cst_51 = arith.constant 1.000000e+00 : f32
    %187 = vector.broadcast %cst_51 : f32 to vector<8x128xf32>
    %188 = arith.addf %187, %186 : vector<8x128xf32>
    %cst_52 = arith.constant 1.000000e+00 : f32
    %189 = vector.broadcast %cst_52 : f32 to vector<8x128xf32>
    %190 = arith.divf %189, %188 : vector<8x128xf32>
    %c0_53 = arith.constant 0 : index
    %c0_54 = arith.constant 0 : index
    %191 = vector.load %arg13[%c0_53, %c0_54] : memref<8x128xf32, #tpu.memory_space<vmem>>, vector<8x128xf32>
    tpu.vector_store %arg13[%c0_53, %c0_54], %190 {strides = array<i32>} : memref<8x128xf32, #tpu.memory_space<vmem>>, vector<8x128xf32>,
    return
  }
  func.func @transform_0(%arg0: i32) -> (i32, i32) {
    %c0_i32 = arith.constant 0 : i32
    %c0_i32_0 = arith.constant 0 : i32
    return %arg0, %c0_i32 : i32, i32
  }
  func.func @transform_1(%arg0: i32) -> (i32, i32) {
    %c0_i32 = arith.constant 0 : i32
    %c0_i32_0 = arith.constant 0 : i32
    return %arg0, %c0_i32 : i32, i32
  }
  func.func @transform_2(%arg0: i32) -> i32 {
    %c0_i32 = arith.constant 0 : i32
    %c0_i32_0 = arith.constant 0 : i32
    return %c0_i32 : i32
  }
  func.func @transform_3(%arg0: i32) -> i32 {
    %c0_i32 = arith.constant 0 : i32
    %c0_i32_0 = arith.constant 0 : i32
    return %c0_i32 : i32
  }
  func.func @transform_4(%arg0: i32) -> i32 {
    %c0_i32 = arith.constant 0 : i32
    %c0_i32_0 = arith.constant 0 : i32
    return %c0_i32 : i32
  }
  func.func @transform_5(%arg0: i32) -> i32 {
    %c0_i32 = arith.constant 0 : i32
    %c0_i32_0 = arith.constant 0 : i32
    return %c0_i32 : i32
  }
  func.func @transform_6(%arg0: i32) -> i32 {
    %c0_i32 = arith.constant 0 : i32
    %c0_i32_0 = arith.constant 0 : i32
    return %c0_i32 : i32
  }
  func.func @transform_7(%arg0: i32) -> i32 {
    %c0_i32 = arith.constant 0 : i32
    %c0_i32_0 = arith.constant 0 : i32
    return %c0_i32 : i32
  }
  func.func @transform_8(%arg0: i32) -> i32 {
    %c0_i32 = arith.constant 0 : i32
    %c0_i32_0 = arith.constant 0 : i32
    return %c0_i32 : i32
  }
  func.func @transform_9(%arg0: i32) -> i32 {
    %c0_i32 = arith.constant 0 : i32
    %c0_i32_0 = arith.constant 0 : i32
    return %c0_i32 : i32
  }
  func.func @transform_10(%arg0: i32) -> i32 {
    %c0_i32 = arith.constant 0 : i32
    %c0_i32_0 = arith.constant 0 : i32
    return %c0_i32 : i32
  }
  func.func @transform_11(%arg0: i32) -> i32 {
    %c0_i32 = arith.constant 0 : i32
    %c0_i32_0 = arith.constant 0 : i32
    return %c0_i32 : i32
  }
  func.func @transform_12(%arg0: i32) -> (i32, i32) {
    %c0_i32 = arith.constant 0 : i32
    %c0_i32_0 = arith.constant 0 : i32
    return %arg0, %c0_i32 : i32, i32
  }
}

</mosaic_0001>

<llo_original>
// kernel: tpu_custom_call.1
$region0: #{tpu_custom_call.1}
  #allocation0 [shape = 'u32[]', space=smem, size = 0x4, offset = 0x4, fixed_abs, tag = 'smem constant byte address 0x4 - core index']
  #allocation1 [shape = 'u32[72,128]{1,0:T(1,128)}', space=vmem, size = 0x9000, scoped, tag = 'internal scratch']
  #allocation2 [shape = 'f32[1]{0:T(128)S(6)}', space=smem, size = 0x200, scoped, tag = 'scoped memory for tpu_custom_call.1']
  %s0 = inlined_call_operand.hbm [shape: f32[8,128], index: 0, kind: input, shape index: {}]
  %s1 = inlined_call_operand.hbm [shape: f32[8,128], index: 1, kind: input, shape index: {}]
  %s2 = inlined_call_operand.vmem [shape: f32[8], index: 2, kind: input, shape index: {}]
  %s3 = inlined_call_operand.vmem [shape: f32[4], index: 3, kind: input, shape index: {}]
  %s4 = inlined_call_operand.vmem [shape: f32[8], index: 4, kind: input, shape index: {}]
  %s5 = inlined_call_operand.vmem [shape: f32[2], index: 5, kind: input, shape index: {}]
  %s6 = inlined_call_operand.vmem [shape: f32[8], index: 6, kind: input, shape index: {}]
  %s7 = inlined_call_operand.vmem [shape: f32[4], index: 7, kind: input, shape index: {}]
  %s8 = inlined_call_operand.vmem [shape: f32[8], index: 8, kind: input, shape index: {}]
  %s9 = inlined_call_operand.vmem [shape: f32[2], index: 9, kind: input, shape index: {}]
  %s10 = inlined_call_operand.vmem [shape: f32[2], index: 10, kind: input, shape index: {}]
  %s11 = inlined_call_operand.<no memory space> [shape: f32[1], index: 11, kind: input, shape index: {}]
  %s12 = inlined_call_operand.hbm [shape: f32[8,128], index: 12, kind: output, shape index: {}]
  %s13 = sld [smem:[#allocation0]]
  $region102: #{tpu_custom_call.1} parent=0
    _
  %s15 = ssub.s32 1, %s13
  %s16 = scalar_select 0, %s15, %s13
  %17 = sst [smem:[#allocation2]] %s11
  $region1: #{tpu_custom_call.1} parent=0
    #allocation3 [shape = 'u8[4096]{0}', space=vmem, size = 0x1000, scoped, tag = 'input window, operand 0, single buffered']
    #allocation4 [shape = 's32[1]{0}', space=sflag, size = 0x4, scoped, tag = 'scoped memory for tpu_custom_call.1']
    #allocation5 [shape = 's32[1]{0}', space=sflag, size = 0x4, scoped, tag = 'scoped memory for tpu_custom_call.1']
    #allocation6 [shape = 's32[1]{0}', space=sflag, size = 0x4, scoped, tag = 'scoped memory for tpu_custom_call.1']
    #allocation7 [shape = 'u8[4096]{0}', space=vmem, size = 0x1000, scoped, tag = 'input window, operand 1, single buffered']
    #allocation8 [shape = 's32[1]{0}', space=sflag, size = 0x4, scoped, tag = 'scoped memory for tpu_custom_call.1']
    #allocation9 [shape = 'u8[512]{0}', space=smem, size = 0x200, scoped, tag = 'input window, operand 2, single buffered']
    #allocation10 [shape = 'u8[512]{0}', space=smem, size = 0x200, scoped, tag = 'input window, operand 3, single buffered']
    #allocation11 [shape = 's32[1]{0}', space=sflag, size = 0x4, scoped, tag = 'scoped memory for tpu_custom_call.1']
    #allocation12 [shape = 'u8[512]{0}', space=smem, size = 0x200, scoped, tag = 'input window, operand 4, single buffered']
    #allocation13 [shape = 'u8[512]{0}', space=smem, size = 0x200, scoped, tag = 'input window, operand 5, single buffered']
    #allocation14 [shape = 's32[1]{0}', space=sflag, size = 0x4, scoped, tag = 'scoped memory for tpu_custom_call.1']
    #allocation15 [shape = 'u8[512]{0}', space=smem, size = 0x200, scoped, tag = 'input window, operand 6, single buffered']
    #allocation16 [shape = 'u8[512]{0}', space=smem, size = 0x200, scoped, tag = 'input window, operand 7, single buffered']
    #allocation17 [shape = 's32[1]{0}', space=sflag, size = 0x4, scoped, tag = 'scoped memory for tpu_custom_call.1']
    #allocation18 [shape = 'u8[512]{0}', space=smem, size = 0x200, scoped, tag = 'input window, operand 8, single buffered']
    #allocation19 [shape = 'u8[512]{0}', space=smem, size = 0x200, scoped, tag = 'input window, operand 9, single buffered']
    #allocation20 [shape = 's32[1]{0}', space=sflag, size = 0x4, scoped, tag = 'scoped memory for tpu_custom_call.1']
    #allocation21 [shape = 'u8[512]{0}', space=smem, size = 0x200, scoped, tag = 'input window, operand 10, single buffered']
    #allocation22 [shape = 'u8[4096]{0}', space=vmem, size = 0x1000, scoped, tag = 'output window, operand 0, single buffered']
    %18 = vsyncpa [#allocation4], 0
    %19 = vsyncpa [#allocation8], 0
    %20 = vsyncpa [#allocation6], 0
    %21 = vsyncpa [#allocation11], 0
    %22 = vsyncpa [#allocation14], 0
    %23 = vsyncpa [#allocation17], 0
    %24 = vsyncpa [#allocation20], 0
    %25 = vsyncpa [#allocation5], 0
    // Predicated region
    $region2: #{tpu_custom_call.1} parent=1 // pred_check
      _
    $region3: #{tpu_custom_call.1} parent=1 // pred_check_branch
      %27 = sbr.rel (0) target = $region5
    $region4: #{tpu_custom_call.1} parent=1 // pred_region
      %29 = vsyncadd [#allocation4], 0
      %s31 = sshll.u32 %s0, 4
      %s32 = int_to_ptr.hbm [resolvable:$true] %s31
      %s33 = sshll.u32 [#allocation3], 4
      %s34 = int_to_ptr.vmem [resolvable:$true] %s33
      %36 = dma.hbm_to_vmem [thread:$0]  %s32, 128, %s34, [#allocation4]
    $region5: #{tpu_custom_call.1} parent=1 // pred_fallthru
      _
    // Predicated region
    $region6: #{tpu_custom_call.1} parent=1 // pred_check
      _
    $region7: #{tpu_custom_call.1} parent=1 // pred_check_branch
      %38 = sbr.rel (0) target = $region9
    $region8: #{tpu_custom_call.1} parent=1 // pred_region
      %40 = vsyncadd [#allocation8], 0
      %s42 = sshll.u32 %s1, 4
      %s43 = int_to_ptr.hbm [resolvable:$true] %s42
      %s44 = sshll.u32 [#allocation7], 4
      %s45 = int_to_ptr.vmem [resolvable:$true] %s44
      %47 = dma.hbm_to_vmem [thread:$0]  %s43, 128, %s45, [#allocation8]
    $region9: #{tpu_custom_call.1} parent=1 // pred_fallthru
      _
    // Predicated region
    $region10: #{tpu_custom_call.1} parent=1 // pred_check
      _
    $region11: #{tpu_custom_call.1} parent=1 // pred_check_branch
      %49 = sbr.rel (0) target = $region13
    $region12: #{tpu_custom_call.1} parent=1 // pred_region
      %51 = vsyncadd [#allocation6], 0
      %s53 = sshll.u32 %s2, 4
      %s54 = int_to_ptr.vmem [resolvable:$true] %s53
      %56 = dma.vmem_to_smem %s54, 16, [#allocation9], [#allocation6]
    $region13: #{tpu_custom_call.1} parent=1 // pred_fallthru
      _
    // Predicated region
    $region14: #{tpu_custom_call.1} parent=1 // pred_check
      _
    $region15: #{tpu_custom_call.1} parent=1 // pred_check_branch
      %58 = sbr.rel (0) target = $region17
    $region16: #{tpu_custom_call.1} parent=1 // pred_region
      %60 = vsyncadd [#allocation11], 0
      %s62 = sshll.u32 %s3, 4
      %s63 = int_to_ptr.vmem [resolvable:$true] %s62
      %65 = dma.vmem_to_smem %s63, 16, [#allocation10], [#allocation11]
    $region17: #{tpu_custom_call.1} parent=1 // pred_fallthru
      _
    // Predicated region
    $region18: #{tpu_custom_call.1} parent=1 // pred_check
      _
    $region19: #{tpu_custom_call.1} parent=1 // pred_check_branch
      %67 = sbr.rel (0) target = $region21
    $region20: #{tpu_custom_call.1} parent=1 // pred_region
      %69 = vsyncadd [#allocation11], 0
      %s71 = sshll.u32 %s4, 4
      %s72 = int_to_ptr.vmem [resolvable:$true] %s71
      %74 = dma.vmem_to_smem %s72, 16, [#allocation12], [#allocation11]
    $region21: #{tpu_custom_call.1} parent=1 // pred_fallthru
      _
    // Predicated region
    $region22: #{tpu_custom_call.1} parent=1 // pred_check
      _
    $region23: #{tpu_custom_call.1} parent=1 // pred_check_branch
      %76 = sbr.rel (0) target = $region25
    $region24: #{tpu_custom_call.1} parent=1 // pred_region
      %78 = vsyncadd [#allocation14], 0
      %s80 = sshll.u32 %s5, 4
      %s81 = int_to_ptr.vmem [resolvable:$true] %s80
      %83 = dma.vmem_to_smem %s81, 16, [#allocation13], [#allocation14]
    $region25: #{tpu_custom_call.1} parent=1 // pred_fallthru
      _
    // Predicated region
    $region26: #{tpu_custom_call.1} parent=1 // pred_check
      _
    $region27: #{tpu_custom_call.1} parent=1 // pred_check_branch
      %85 = sbr.rel (0) target = $region29
    $region28: #{tpu_custom_call.1} parent=1 // pred_region
      %87 = vsyncadd [#allocation14], 0
      %s89 = sshll.u32 %s6, 4
      %s90 = int_to_ptr.vmem [resolvable:$true] %s89
      %92 = dma.vmem_to_smem %s90, 16, [#allocation15], [#allocation14]
    $region29: #{tpu_custom_call.1} parent=1 // pred_fallthru
      _
    // Predicated region
    $region30: #{tpu_custom_call.1} parent=1 // pred_check
      _
    $region31: #{tpu_custom_call.1} parent=1 // pred_check_branch
      %94 = sbr.rel (0) target = $region33
    $region32: #{tpu_custom_call.1} parent=1 // pred_region
      %96 = vsyncadd [#allocation17], 0
      %s98 = sshll.u32 %s7, 4
      %s99 = int_to_ptr.vmem [resolvable:$true] %s98
      %101 = dma.vmem_to_smem %s99, 16, [#allocation16], [#allocation17]
    $region33: #{tpu_custom_call.1} parent=1 // pred_fallthru
      _
    // Predicated region
    $region34: #{tpu_custom_call.1} parent=1 // pred_check
      _
    $region35: #{tpu_custom_call.1} parent=1 // pred_check_branch
      %103 = sbr.rel (0) target = $region37
    $region36: #{tpu_custom_call.1} parent=1 // pred_region
      %105 = vsyncadd [#allocation17], 0
      %s107 = sshll.u32 %s8, 4
      %s108 = int_to_ptr.vmem [resolvable:$true] %s107
      %110 = dma.vmem_to_smem %s108, 16, [#allocation18], [#allocation17]
    $region37: #{tpu_custom_call.1} parent=1 // pred_fallthru
      _
    // Predicated region
    $region38: #{tpu_custom_call.1} parent=1 // pred_check
      _
    $region39: #{tpu_custom_call.1} parent=1 // pred_check_branch
      %112 = sbr.rel (0) target = $region41
    $region40: #{tpu_custom_call.1} parent=1 // pred_region
      %114 = vsyncadd [#allocation20], 0
      %s116 = sshll.u32 %s9, 4
      %s117 = int_to_ptr.vmem [resolvable:$true] %s116
      %119 = dma.vmem_to_smem %s117, 16, [#allocation19], [#allocation20]
    $region41: #{tpu_custom_call.1} parent=1 // pred_fallthru
      _
    // Predicated region
    $region42: #{tpu_custom_call.1} parent=1 // pred_check
      _
    $region43: #{tpu_custom_call.1} parent=1 // pred_check_branch
      %121 = sbr.rel (0) target = $region45
    $region44: #{tpu_custom_call.1} parent=1 // pred_region
      %123 = vsyncadd [#allocation20], 0
      %s125 = sshll.u32 %s10, 4
      %s126 = int_to_ptr.vmem [resolvable:$true] %s125
      %128 = dma.vmem_to_smem %s126, 16, [#allocation21], [#allocation20]
    $region45: #{tpu_custom_call.1} parent=1 // pred_fallthru
      _
    // Predicated region
    $region46: #{tpu_custom_call.1} parent=1 // pred_check
      _
    $region47: #{tpu_custom_call.1} parent=1 // pred_check_branch
      %130 = sbr.rel (0) target = $region49
    $region48: #{tpu_custom_call.1} parent=1 // pred_region
      _
    $region49: #{tpu_custom_call.1} parent=1 // pred_fallthru
      _
    // Predicated region
    $region50: #{tpu_custom_call.1} parent=1 // pred_check
      _
    $region51: #{tpu_custom_call.1} parent=1 // pred_check_branch
      %132 = sbr.rel (0) target = $region53
    $region52: #{tpu_custom_call.1} parent=1 // pred_region
      %134 = dma.done [#allocation4], 128
    $region53: #{tpu_custom_call.1} parent=1 // pred_fallthru
      _
    // Predicated region
    $region54: #{tpu_custom_call.1} parent=1 // pred_check
      _
    $region55: #{tpu_custom_call.1} parent=1 // pred_check_branch
      %136 = sbr.rel (0) target = $region57
    $region56: #{tpu_custom_call.1} parent=1 // pred_region
      %138 = dma.done [#allocation8], 128
    $region57: #{tpu_custom_call.1} parent=1 // pred_fallthru
      _
    // Predicated region
    $region58: #{tpu_custom_call.1} parent=1 // pred_check
      _
    $region59: #{tpu_custom_call.1} parent=1 // pred_check_branch
      %140 = sbr.rel (0) target = $region61
    $region60: #{tpu_custom_call.1} parent=1 // pred_region
      %142 = dma.done [#allocation6], 16
    $region61: #{tpu_custom_call.1} parent=1 // pred_fallthru
      _
    // Predicated region
    $region62: #{tpu_custom_call.1} parent=1 // pred_check
      _
    $region63: #{tpu_custom_call.1} parent=1 // pred_check_branch
      %144 = sbr.rel (0) target = $region65
    $region64: #{tpu_custom_call.1} parent=1 // pred_region
      %146 = dma.done [#allocation11], 16
    $region65: #{tpu_custom_call.1} parent=1 // pred_fallthru
      _
    // Predicated region
    $region66: #{tpu_custom_call.1} parent=1 // pred_check
      _
    $region67: #{tpu_custom_call.1} parent=1 // pred_check_branch
      %148 = sbr.rel (0) target = $region69
    $region68: #{tpu_custom_call.1} parent=1 // pred_region
      %150 = dma.done [#allocation11], 16
    $region69: #{tpu_custom_call.1} parent=1 // pred_fallthru
      _
    // Predicated region
    $region70: #{tpu_custom_call.1} parent=1 // pred_check
      _
    $region71: #{tpu_custom_call.1} parent=1 // pred_check_branch
      %152 = sbr.rel (0) target = $region73
    $region72: #{tpu_custom_call.1} parent=1 // pred_region
      %154 = dma.done [#allocation14], 16
    $region73: #{tpu_custom_call.1} parent=1 // pred_fallthru
      _
    // Predicated region
    $region74: #{tpu_custom_call.1} parent=1 // pred_check
      _
    $region75: #{tpu_custom_call.1} parent=1 // pred_check_branch
      %156 = sbr.rel (0) target = $region77
    $region76: #{tpu_custom_call.1} parent=1 // pred_region
      %158 = dma.done [#allocation14], 16
    $region77: #{tpu_custom_call.1} parent=1 // pred_fallthru
      _
    // Predicated region
    $region78: #{tpu_custom_call.1} parent=1 // pred_check
      _
    $region79: #{tpu_custom_call.1} parent=1 // pred_check_branch
      %160 = sbr.rel (0) target = $region81
    $region80: #{tpu_custom_call.1} parent=1 // pred_region
      %162 = dma.done [#allocation17], 16
    $region81: #{tpu_custom_call.1} parent=1 // pred_fallthru
      _
    // Predicated region
    $region82: #{tpu_custom_call.1} parent=1 // pred_check
      _
    $region83: #{tpu_custom_call.1} parent=1 // pred_check_branch
      %164 = sbr.rel (0) target = $region85
    $region84: #{tpu_custom_call.1} parent=1 // pred_region
      %166 = dma.done [#allocation17], 16
    $region85: #{tpu_custom_call.1} parent=1 // pred_fallthru
      _
    // Predicated region
    $region86: #{tpu_custom_call.1} parent=1 // pred_check
      _
    $region87: #{tpu_custom_call.1} parent=1 // pred_check_branch
      %168 = sbr.rel (0) target = $region89
    $region88: #{tpu_custom_call.1} parent=1 // pred_region
      %170 = dma.done [#allocation20], 16
    $region89: #{tpu_custom_call.1} parent=1 // pred_fallthru
      _
    // Predicated region
    $region90: #{tpu_custom_call.1} parent=1 // pred_check
      _
    $region91: #{tpu_custom_call.1} parent=1 // pred_check_branch
      %172 = sbr.rel (0) target = $region93
    $region92: #{tpu_custom_call.1} parent=1 // pred_region
      %174 = dma.done [#allocation20], 16
    $region93: #{tpu_custom_call.1} parent=1 // pred_fallthru
      _
    %175 = sfence
    %v176 = vld [vmem:[#allocation3] sm:$0xff]
    %v177 = vld [vmem:[#allocation7] sm:$0xff]
    %s178 = sld [smem:[#allocation13]]
    %v179 = vstv %s178
    %v180 = vadd.f32 %v176, %v179
    %s181 = sld [smem:[#allocation13 + $0x1]]
    %v182 = vstv %s181
    %v183 = vadd.f32 %v177, %v182
    %s184 = sld [smem:[#allocation9]]
    %v185 = vstv %s184
    %v186 = vmul.f32 %v185, %v176
    %s187 = sld [smem:[#allocation9 + $0x4]]
    %v188 = vstv %s187
    %v189 = vmul.f32 %v188, %v177
    %s190 = sld [smem:[#allocation10]]
    %v191 = vstv %s190
    %v192 = vadd.f32 %v189, %v191
    %v193 = vadd.f32 %v186, %v192
    %v194 = vmax.f32 %v193, 0.0
    %s195 = sld [smem:[#allocation12]]
    %v196 = vstv %s195
    %v197 = vmul.f32 %v196, %v194
    %v198 = vadd.f32 %v180, %v197
    %s199 = sld [smem:[#allocation12 + $0x1]]
    %v200 = vstv %s199
    %v201 = vmul.f32 %v200, %v194
    %v202 = vadd.f32 %v183, %v201
    %s203 = sld [smem:[#allocation9 + $0x1]]
    %v204 = vstv %s203
    %v205 = vmul.f32 %v204, %v176
    %s206 = sld [smem:[#allocation9 + $0x5]]
    %v207 = vstv %s206
    %v208 = vmul.f32 %v207, %v177
    %s209 = sld [smem:[#allocation10 + $0x1]]
    %v210 = vstv %s209
    %v211 = vadd.f32 %v208, %v210
    %v212 = vadd.f32 %v205, %v211
    %v213 = vmax.f32 %v212, 0.0
    %s214 = sld [smem:[#allocation12 + $0x2]]
    %v215 = vstv %s214
    %v216 = vmul.f32 %v215, %v213
    %v217 = vadd.f32 %v198, %v216
    %s218 = sld [smem:[#allocation12 + $0x3]]
    %v219 = vstv %s218
    %v220 = vmul.f32 %v219, %v213
    %v221 = vadd.f32 %v202, %v220
    %s222 = sld [smem:[#allocation9 + $0x2]]
    %v223 = vstv %s222
    %v224 = vmul.f32 %v223, %v176
    %s225 = sld [smem:[#allocation9 + $0x6]]
    %v226 = vstv %s225
    %v227 = vmul.f32 %v226, %v177
    %s228 = sld [smem:[#allocation10 + $0x2]]
    %v229 = vstv %s228
    %v230 = vadd.f32 %v227, %v229
    %v231 = vadd.f32 %v224, %v230
    %v232 = vmax.f32 %v231, 0.0
    %s233 = sld [smem:[#allocation12 + $0x4]]
    %v234 = vstv %s233
    %v235 = vmul.f32 %v234, %v232
    %v236 = vadd.f32 %v217, %v235
    %s237 = sld [smem:[#allocation12 + $0x5]]
    %v238 = vstv %s237
    %v239 = vmul.f32 %v238, %v232
    %v240 = vadd.f32 %v221, %v239
    %s241 = sld [smem:[#allocation9 + $0x3]]
    %v242 = vstv %s241
    %v243 = vmul.f32 %v242, %v176
    %s244 = sld [smem:[#allocation9 + $0x7]]
    %v245 = vstv %s244
    %v246 = vmul.f32 %v245, %v177
    %s247 = sld [smem:[#allocation10 + $0x3]]
    %v248 = vstv %s247
    %v249 = vadd.f32 %v246, %v248
    %v250 = vadd.f32 %v243, %v249
    %v251 = vmax.f32 %v250, 0.0
    %s252 = sld [smem:[#allocation12 + $0x6]]
    %v253 = vstv %s252
    %v254 = vmul.f32 %v253, %v251
    %v255 = vadd.f32 %v236, %v254
    %s256 = sld [smem:[#allocation12 + $0x7]]
    %v257 = vstv %s256
    %v258 = vmul.f32 %v257, %v251
    %v259 = vadd.f32 %v240, %v258
    %s260 = sld [smem:[#allocation19]]
    %v261 = vstv %s260
    %v262 = vadd.f32 %v255, %v261
    %s263 = sld [smem:[#allocation19 + $0x1]]
    %v264 = vstv %s263
    %v265 = vadd.f32 %v259, %v264
    %s266 = sld [smem:[#allocation15]]
    %v267 = vstv %s266
    %v268 = vmul.f32 %v267, %v255
    %s269 = sld [smem:[#allocation15 + $0x4]]
    %v270 = vstv %s269
    %v271 = vmul.f32 %v270, %v259
    %s272 = sld [smem:[#allocation16]]
    %v273 = vstv %s272
    %v274 = vadd.f32 %v271, %v273
    %v275 = vadd.f32 %v268, %v274
    %v276 = vmax.f32 %v275, 0.0
    %s277 = sld [smem:[#allocation18]]
    %v278 = vstv %s277
    %v279 = vmul.f32 %v278, %v276
    %v280 = vadd.f32 %v262, %v279
    %s281 = sld [smem:[#allocation18 + $0x1]]
    %v282 = vstv %s281
    %v283 = vmul.f32 %v282, %v276
    %v284 = vadd.f32 %v265, %v283
    %s285 = sld [smem:[#allocation15 + $0x1]]
    %v286 = vstv %s285
    %v287 = vmul.f32 %v286, %v255
    %s288 = sld [smem:[#allocation15 + $0x5]]
    %v289 = vstv %s288
    %v290 = vmul.f32 %v289, %v259
    %s291 = sld [smem:[#allocation16 + $0x1]]
    %v292 = vstv %s291
    %v293 = vadd.f32 %v290, %v292
    %v294 = vadd.f32 %v287, %v293
    %v295 = vmax.f32 %v294, 0.0
    %s296 = sld [smem:[#allocation18 + $0x2]]
    %v297 = vstv %s296
    %v298 = vmul.f32 %v297, %v295
    %v299 = vadd.f32 %v280, %v298
    %s300 = sld [smem:[#allocation18 + $0x3]]
    %v301 = vstv %s300
    %v302 = vmul.f32 %v301, %v295
    %v303 = vadd.f32 %v284, %v302
    %s304 = sld [smem:[#allocation15 + $0x2]]
    %v305 = vstv %s304
    %v306 = vmul.f32 %v305, %v255
    %s307 = sld [smem:[#allocation15 + $0x6]]
    %v308 = vstv %s307
    %v309 = vmul.f32 %v308, %v259
    %s310 = sld [smem:[#allocation16 + $0x2]]
    %v311 = vstv %s310
    %v312 = vadd.f32 %v309, %v311
    %v313 = vadd.f32 %v306, %v312
    %v314 = vmax.f32 %v313, 0.0
    %s315 = sld [smem:[#allocation18 + $0x4]]
    %v316 = vstv %s315
    %v317 = vmul.f32 %v316, %v314
    %v318 = vadd.f32 %v299, %v317
    %s319 = sld [smem:[#allocation18 + $0x5]]
    %v320 = vstv %s319
    %v321 = vmul.f32 %v320, %v314
    %v322 = vadd.f32 %v303, %v321
    %s323 = sld [smem:[#allocation15 + $0x3]]
    %v324 = vstv %s323
    %v325 = vmul.f32 %v324, %v255
    %s326 = sld [smem:[#allocation15 + $0x7]]
    %v327 = vstv %s326
    %v328 = vmul.f32 %v327, %v259
    %s329 = sld [smem:[#allocation16 + $0x3]]
    %v330 = vstv %s329
    %v331 = vadd.f32 %v328, %v330
    %v332 = vadd.f32 %v325, %v331
    %v333 = vmax.f32 %v332, 0.0
    %s334 = sld [smem:[#allocation18 + $0x6]]
    %v335 = vstv %s334
    %v336 = vmul.f32 %v335, %v333
    %v337 = vadd.f32 %v318, %v336
    %s338 = sld [smem:[#allocation18 + $0x7]]
    %v339 = vstv %s338
    %v340 = vmul.f32 %v339, %v333
    %v341 = vadd.f32 %v322, %v340
    %s342 = sld [smem:[#allocation21]]
    %v343 = vstv %s342
    %v344 = vmul.f32 %v343, %v337
    %s345 = sld [smem:[#allocation21 + $0x1]]
    %v346 = vstv %s345
    %v347 = vmul.f32 %v346, %v341
    %s348 = sld [smem:[#allocation2]]
    %v349 = vstv %s348
    %v350 = vadd.f32 %v347, %v349
    %v351 = vadd.f32 %v344, %v350
    %v352 = vsub.f32 0.0, %v351
    %v353 = vmul.f32 %v352, 1.442695
    %v354 = vpow.pop %v353
    %v355 = vadd.f32 %v354, 1.0
    %v356 = vrcp.pop %v355
    %v357 = vmul.f32 %v355, %v356
    %v358 = vsub.f32 1.0, %v357
    %v359 = vmul.f32 %v356, %v358
    %v360 = vadd.f32 %v356, %v359
    %vm361 = vweird.f32 %v355
    %vm362 = vweird.f32 %v356
    %vm363 = vmor %vm361, %vm362
    %v364 = vsel %vm363, %v356, %v360
    %v365 = vand.u32 2147483647, %v355
    %vm366 = vcmp.eq.f32.partialorder %v365, 8.507059e+37
    %v367 = vand.u32 %v355, 2147483648
    %v368 = vor.u32 1.1754944e-38, %v367
    %v369 = vsel %vm366, %v368, %v364
    %v370 = vmul.f32 1.0, %v369
    %371 = vst [vmem:[#allocation22] sm:$0xff] %v370
    // Predicated region
    $region94: #{tpu_custom_call.1} parent=1 // pred_check
      _
    $region95: #{tpu_custom_call.1} parent=1 // pred_check_branch
      %373 = sbr.rel (0) target = $region97
    $region96: #{tpu_custom_call.1} parent=1 // pred_region
      %375 = vsyncadd [#allocation5], 0
      %s377 = sshll.u32 [#allocation22], 4
      %s378 = int_to_ptr.vmem [resolvable:$true] %s377
      %s379 = sshll.u32 %s12, 4
      %s380 = int_to_ptr.hbm [resolvable:$true] %s379
      %382 = dma.vmem_to_hbm [thread:$0]  %s378, 128, %s380, [#allocation5]
    $region97: #{tpu_custom_call.1} parent=1 // pred_fallthru
      _
    // Predicated region
    $region98: #{tpu_custom_call.1} parent=1 // pred_check
      _
    $region99: #{tpu_custom_call.1} parent=1 // pred_check_branch
      %384 = sbr.rel (0) target = $region101
    $region100: #{tpu_custom_call.1} parent=1 // pred_region
      %386 = dma.done [#allocation5], 128
    $region101: #{tpu_custom_call.1} parent=1 // pred_fallthru
      _
    %387 = vsyncpa [#allocation4], 1
    %388 = vsyncpa [#allocation8], 1
    %389 = vsyncpa [#allocation5], 1
    %390 = vsyncpa [#allocation6], 1
    %391 = vsyncpa [#allocation11], 1
    %392 = vsyncpa [#allocation14], 1
    %393 = vsyncpa [#allocation17], 1
    %394 = vsyncpa [#allocation20], 1

</llo_original>
